<compile_context>
chip_gen: v7x
topology: tpu7x:2x2x1
jax: 0.10.0
libtpu: 0.0.40
codegen_flags: <defaults>
</compile_context>

<pallas_src>
import jax
import jax.numpy as jnp
from jax.experimental import pallas as pl
from jax.experimental.pallas import tpu as pltpu

BN_EPS = 1e-5
LANE = 128
SUB = 8
_TILE_VMEM_BUDGET = 8 * 1024 * 1024   # bytes per single-buffered f32 tile
_PHASE1_ROW_CAP = 8192                 # big tiles amortize grid-step overhead
_PHASE2_ROW_CAP = 4096


def _round_up(x, m):
    return ((x + m - 1) // m) * m


def _cdiv(a, b):
    return (a + b - 1) // b


# ---------- Phase 1: per-feature sum / sum-of-squares of xW (no bias) -------
def _stats_kernel(x_ref, w_ref, sum_ref, ssq_ref):
    i = pl.program_id(1)  # reduction axis (last, "arbitrary")

    @pl.when(i == 0)
    def _():
        sum_ref[...] = jnp.zeros_like(sum_ref)
        ssq_ref[...] = jnp.zeros_like(ssq_ref)

    x = x_ref[...]
    y = jnp.dot(x, w_ref[...], preferred_element_type=jnp.float32)
    # Row reductions on the MXU (ones @ y); the VPU only computes y*y.
    # Result rows are 8 identical copies -> row 0 is read back in the wrapper.
    ones = jnp.ones((SUB, x.shape[0]), dtype=jnp.float32)
    sum_ref[...] += jnp.dot(ones, y, preferred_element_type=jnp.float32)
    ssq_ref[...] += jnp.dot(ones, y * y, preferred_element_type=jnp.float32)


# ---------- Phase 2: matmul with BN scale folded into W, + shift, ReLU ------
def _apply_kernel(x_ref, w_ref, shift_ref, o_ref):
    y = jnp.dot(x_ref[...], w_ref[...], preferred_element_type=jnp.float32)
    o_ref[...] = jnp.maximum(y + shift_ref[...], 0.0)


@jax.jit
def mlp_forward(inputs, W_t, b, gamma, beta):
    """inputs: [B, N, n_in] f32; W_t: [n_in, n_out]. Returns [B, N, n_out]."""
    # NOTE: fc1's bias cancels exactly under training-mode BatchNorm
    # (mean subtraction), so `b` never needs to enter the kernels.
    del b

    B, N, n_in = inputs.shape
    n_out = W_t.shape[1]
    M = B * N
    x2d = inputs.reshape(M, n_in).astype(jnp.float32)

    # ----- row-pack the narrow feature dim into a lane-dense 128-wide slab --
    if n_out < LANE and LANE % n_out == 0 and M % (LANE // n_out) == 0:
        p = LANE // n_out
    else:
        p = 1
    n_lane = p * n_out
    pad_f = _round_up(n_lane, LANE) - n_lane   # nonzero only on fallback path
    n_lane_p = n_lane + pad_f
    Kp = p * n_in
    Mr = M // p

    W = W_t.astype(jnp.float32)
    W_blk = jnp.kron(jnp.eye(p, dtype=jnp.float32), W) if p > 1 else W
    if pad_f:
        # TODO(synk): fallback lane padding needs one post-kernel slice copy.
        W_blk = jnp.pad(W_blk, ((0, 0), (0, pad_f)))

    xr = x2d.reshape(Mr, Kp)                   # free contiguous view

    # ---------------- phase 1: streaming batch statistics -------------------
    by_vmem1 = max(SUB, (_TILE_VMEM_BUDGET // (Kp * 4)) // SUB * SUB)
    tm1 = min(_PHASE1_ROW_CAP, by_vmem1, _round_up(max(Mr, 1), SUB))
    tiles1 = _cdiv(Mr, tm1)
    T = _cdiv(tiles1, 2)                       # tiles per core (2-way split)
    Mr1 = 2 * T * tm1
    x1 = xr if Mr1 == Mr else jnp.pad(xr, ((0, Mr1 - Mr), (0, 0)))
    # Zero-padded rows contribute exactly 0 to sum/ssq (no bias in kernel).

    stat_shape = jax.ShapeDtypeStruct((2 * SUB, n_lane_p), jnp.float32)
    stat_spec = pl.BlockSpec((SUB, n_lane_p), lambda c, i: (c, 0))
    s, ss = pl.pallas_call(
        _stats_kernel,
        out_shape=(stat_shape, stat_shape),
        grid_spec=pltpu.PrefetchScalarGridSpec(
            num_scalar_prefetch=0,
            grid=(2, T),
            in_specs=[
                pl.BlockSpec((tm1, Kp), lambda c, i: (c * T + i, 0)),
                pl.BlockSpec((Kp, n_lane_p), lambda c, i: (0, 0)),  # resident
            ],
            out_specs=(stat_spec, stat_spec),
        ),
        compiler_params=pltpu.CompilerParams(
            dimension_semantics=("parallel", "arbitrary")),
    )(x1, W_blk)

    # ---------------- finalize BN stats (O(n_out) work) ---------------------
    lane_sum = s[0] + s[SUB]                   # combine the two cores' partials
    lane_ssq = ss[0] + ss[SUB]
    feat_sum = lane_sum[: p * n_out].reshape(p, n_out).sum(axis=0)
    feat_ssq = lane_ssq[: p * n_out].reshape(p, n_out).sum(axis=0)
    mean_xw = feat_sum / M
    var = jnp.maximum(feat_ssq / M - mean_xw * mean_xw, 0.0)  # biased variance
    inv_std = jax.lax.rsqrt(var + BN_EPS)
    scale = gamma.astype(jnp.float32) * inv_std
    shift = beta.astype(jnp.float32) - mean_xw * scale

    scale_lane = jnp.tile(scale, p)
    shift_lane = jnp.tile(shift, p)
    if pad_f:
        scale_lane = jnp.pad(scale_lane, (0, pad_f))
        shift_lane = jnp.pad(shift_lane, (0, pad_f))
    W2 = W_blk * scale_lane[None, :]           # fold BN scale into W
    shift_row = shift_lane.reshape(1, n_lane_p)

    # ---------------- phase 2: recompute cheap matmul + shift + ReLU --------
    by_vmem2 = max(SUB, (_TILE_VMEM_BUDGET // (n_lane_p * 4)) // SUB * SUB)
    tm2 = min(_PHASE2_ROW_CAP, by_vmem2)
    if Mr <= tm2:
        tm2 = Mr                               # single full block
    grid2 = _cdiv(Mr, tm2)                     # ragged tail: writes are masked

    out_p = pl.pallas_call(
        _apply_kernel,
        out_shape=jax.ShapeDtypeStruct((Mr, n_lane_p), jnp.float32),
        grid_spec=pltpu.PrefetchScalarGridSpec(
            num_scalar_prefetch=0,
            grid=(grid2,),
            in_specs=[
                pl.BlockSpec((tm2, Kp), lambda i: (i, 0)),
                pl.BlockSpec((Kp, n_lane_p), lambda i: (0, 0)),   # resident
                pl.BlockSpec((1, n_lane_p), lambda i: (0, 0)),    # resident
            ],
            out_specs=pl.BlockSpec((tm2, n_lane_p), lambda i: (i, 0)),
        ),
        compiler_params=pltpu.CompilerParams(
            dimension_semantics=("parallel",)),
    )(xr, W2, shift_row)

    if pad_f:
        out2d = out_p[:, :n_out]               # fallback path only
    else:
        out2d = out_p.reshape(M, n_out)        # free view (packed path)
    return out2d.reshape(B, N, n_out)


def init_params(key, n_in, n_out):
    # xavier_normal for fc1.weight: std = sqrt(2 / (fan_in + fan_out))
    std = (2.0 / (n_in + n_out)) ** 0.5
    W = jax.random.normal(key, (n_out, n_in), dtype=jnp.float32) * std
    W_t = W.T                                            # (n_in, n_out)
    b = jnp.full((n_out,), 0.1, dtype=jnp.float32)       # bias.fill_(0.1)
    gamma = jnp.ones((n_out,), dtype=jnp.float32)        # bn.weight = 1
    beta = jnp.zeros((n_out,), dtype=jnp.float32)        # bn.bias  = 0
    return W_t, b, gamma, beta


def reference_forward(inputs, W_t, b, gamma, beta):
    B, N, n_in = inputs.shape
    y = inputs.reshape(B * N, n_in) @ W_t + b[None, :]
    mean = y.mean(axis=0, keepdims=True)
    var = ((y - mean) ** 2).mean(axis=0, keepdims=True)  # biased, BN training
    z = (y - mean) / jnp.sqrt(var + BN_EPS) * gamma[None, :] + beta[None, :]
    return jnp.maximum(z, 0.0).reshape(B, N, -1)


if __name__ == "__main__":
    B, N = 2, 8                        # batch, num objects
    n_in, n_hid, n_out = 16, 32, 32    # n_hid unused by forward (matches module)
    # TODO(synk): dropout_prob exists on the module but is never applied in
    # forward(), so it is intentionally not implemented here.

    key = jax.random.PRNGKey(0)
    k_x, k_w = jax.random.split(key)
    inputs = jax.random.normal(k_x, (B, N, n_in), dtype=jnp.float32)
    W_t, b, gamma, beta = init_params(k_w, n_in, n_out)

    out = mlp_forward(inputs, W_t, b, gamma, beta)
    out = jax.block_until_ready(out)

    ref = reference_forward(inputs, W_t, b, gamma, beta)
    assert out.shape == (B, N, n_out)
    assert jnp.allclose(out, ref, atol=1e-4, rtol=1e-4), "mismatch vs reference"

    print("KERNEL_OK")
</pallas_src>

<mosaic_0001>
module attributes {stable_mosaic.version = 11 : i64} {
  func.func @_stats_kernel(%arg0: i32, %arg1: i32, %arg2: memref<8x64xf32, #tpu.memory_space<vmem>>, %arg3: memref<64x128xf32, #tpu.memory_space<vmem>>, %arg4: memref<8x128xf32, #tpu.memory_space<vmem>>, %arg5: memref<8x128xf32, #tpu.memory_space<vmem>>) attributes {dimension_semantics = [#tpu.dimension_semantics<parallel>, #tpu.dimension_semantics<arbitrary>], iteration_bounds = array<i64: 2, 1>, scalar_prefetch = 0 : i64, scratch_operands = 0 : i64, tpu.core_type = #tpu.core_type<tc>, window_params = [{transform_indices = @transform_0, window_bounds = array<i64: 8, 64>}, {pipeline_mode = #tpu.pipeline_mode<synchronous>, transform_indices = @transform_1, window_bounds = array<i64: 64, 128>}, {transform_indices = @transform_2, window_bounds = array<i64: 8, 128>}, {transform_indices = @transform_3, window_bounds = array<i64: 8, 128>}]} {
    %c0_i32 = arith.constant 0 : i32
    %0 = arith.cmpi eq, %arg1, %c0_i32 : i32
    %1 = arith.extui %0 : i1 to i32
    %c0_i32_0 = arith.constant 0 : i32
    %2 = arith.cmpi ne, %1, %c0_i32_0 : i32
    scf.if %2 {
      %cst_15 = arith.constant 0.000000e+00 : f32
      %16 = vector.broadcast %cst_15 : f32 to vector<8x128xf32>
      %c0_16 = arith.constant 0 : index
      %c0_17 = arith.constant 0 : index
      %17 = vector.load %arg4[%c0_16, %c0_17] : memref<8x128xf32, #tpu.memory_space<vmem>>, vector<8x128xf32>
      tpu.vector_store %arg4[%c0_16, %c0_17], %16 {strides = array<i32>} : memref<8x128xf32, #tpu.memory_space<vmem>>, vector<8x128xf32>,
      %cst_18 = arith.constant 0.000000e+00 : f32
      %18 = vector.broadcast %cst_18 : f32 to vector<8x128xf32>
      %c0_19 = arith.constant 0 : index
      %c0_20 = arith.constant 0 : index
      %19 = vector.load %arg5[%c0_19, %c0_20] : memref<8x128xf32, #tpu.memory_space<vmem>>, vector<8x128xf32>
      tpu.vector_store %arg5[%c0_19, %c0_20], %18 {strides = array<i32>} : memref<8x128xf32, #tpu.memory_space<vmem>>, vector<8x128xf32>,
    } else {
    }
    %c0 = arith.constant 0 : index
    %c0_1 = arith.constant 0 : index
    %3 = vector.load %arg2[%c0, %c0_1] : memref<8x64xf32, #tpu.memory_space<vmem>>, vector<8x64xf32>
    %c0_2 = arith.constant 0 : index
    %c0_3 = arith.constant 0 : index
    %4 = vector.load %arg3[%c0_2, %c0_3] : memref<64x128xf32, #tpu.memory_space<vmem>>, vector<64x128xf32>
    %cst = arith.constant dense<0.000000e+00> : vector<8x128xf32>
    %5 = tpu.matmul %3, %4, %cst {dimension_numbers = #tpu.dot_dimension_numbers<[1], [0], [0], [1], [0, 0, 1, 1], [], []>} : vector<8x64xf32>, vector<64x128xf32>, vector<8x128xf32> -> vector<8x128xf32>
    %cst_4 = arith.constant 1.000000e+00 : f32
    %6 = vector.broadcast %cst_4 : f32 to vector<8x8xf32>
    %c0_5 = arith.constant 0 : index
    %c0_6 = arith.constant 0 : index
    %7 = vector.load %arg4[%c0_5, %c0_6] : memref<8x128xf32, #tpu.memory_space<vmem>>, vector<8x128xf32>
    %cst_7 = arith.constant dense<0.000000e+00> : vector<8x128xf32>
    %8 = tpu.matmul %6, %5, %cst_7 {dimension_numbers = #tpu.dot_dimension_numbers<[1], [0], [0], [1], [0, 0, 1, 1], [], []>} : vector<8x8xf32>, vector<8x128xf32>, vector<8x128xf32> -> vector<8x128xf32>
    %9 = arith.addf %7, %8 : vector<8x128xf32>
    %c0_8 = arith.constant 0 : index
    %c0_9 = arith.constant 0 : index
    %10 = vector.load %arg4[%c0_8, %c0_9] : memref<8x128xf32, #tpu.memory_space<vmem>>, vector<8x128xf32>
    tpu.vector_store %arg4[%c0_8, %c0_9], %9 {strides = array<i32>} : memref<8x128xf32, #tpu.memory_space<vmem>>, vector<8x128xf32>,
    %c0_10 = arith.constant 0 : index
    %c0_11 = arith.constant 0 : index
    %11 = vector.load %arg5[%c0_10, %c0_11] : memref<8x128xf32, #tpu.memory_space<vmem>>, vector<8x128xf32>
    %12 = arith.mulf %5, %5 : vector<8x128xf32>
    %cst_12 = arith.constant dense<0.000000e+00> : vector<8x128xf32>
    %13 = tpu.matmul %6, %12, %cst_12 {dimension_numbers = #tpu.dot_dimension_numbers<[1], [0], [0], [1], [0, 0, 1, 1], [], []>} : vector<8x8xf32>, vector<8x128xf32>, vector<8x128xf32> -> vector<8x128xf32>
    %14 = arith.addf %11, %13 : vector<8x128xf32>
    %c0_13 = arith.constant 0 : index
    %c0_14 = arith.constant 0 : index
    %15 = vector.load %arg5[%c0_13, %c0_14] : memref<8x128xf32, #tpu.memory_space<vmem>>, vector<8x128xf32>
    tpu.vector_store %arg5[%c0_13, %c0_14], %14 {strides = array<i32>} : memref<8x128xf32, #tpu.memory_space<vmem>>, vector<8x128xf32>,
    return
  }
  func.func @transform_0(%arg0: i32, %arg1: i32) -> (i32, i32) {
    %c1_i32 = arith.constant 1 : i32
    %0 = arith.muli %arg0, %c1_i32 : i32
    %1 = arith.addi %0, %arg1 : i32
    %c0_i32 = arith.constant 0 : i32
    %c0_i32_0 = arith.constant 0 : i32
    return %1, %c0_i32 : i32, i32
  }
  func.func @transform_1(%arg0: i32, %arg1: i32) -> (i32, i32) {
    %c0_i32 = arith.constant 0 : i32
    %c0_i32_0 = arith.constant 0 : i32
    %c0_i32_1 = arith.constant 0 : i32
    return %c0_i32, %c0_i32_0 : i32, i32
  }
  func.func @transform_2(%arg0: i32, %arg1: i32) -> (i32, i32) {
    %c0_i32 = arith.constant 0 : i32
    %c0_i32_0 = arith.constant 0 : i32
    return %arg0, %c0_i32 : i32, i32
  }
  func.func @transform_3(%arg0: i32, %arg1: i32) -> (i32, i32) {
    %c0_i32 = arith.constant 0 : i32
    %c0_i32_0 = arith.constant 0 : i32
    return %arg0, %c0_i32 : i32, i32
  }
}

module attributes {stable_mosaic.version = 11 : i64} {
  func.func @_apply_kernel(%arg0: i32, %arg1: memref<4x64xf32, #tpu.memory_space<vmem>>, %arg2: memref<64x128xf32, #tpu.memory_space<vmem>>, %arg3: memref<1x128xf32, #tpu.memory_space<vmem>>, %arg4: memref<4x128xf32, #tpu.memory_space<vmem>>) attributes {dimension_semantics = [#tpu.dimension_semantics<parallel>], iteration_bounds = array<i64: 1>, scalar_prefetch = 0 : i64, scratch_operands = 0 : i64, tpu.core_type = #tpu.core_type<tc>, window_params = [{transform_indices = @transform_0, window_bounds = array<i64: 4, 64>}, {pipeline_mode = #tpu.pipeline_mode<synchronous>, transform_indices = @transform_1, window_bounds = array<i64: 64, 128>}, {pipeline_mode = #tpu.pipeline_mode<synchronous>, transform_indices = @transform_2, window_bounds = array<i64: 1, 128>}, {transform_indices = @transform_3, window_bounds = array<i64: 4, 128>}]} {
    %c0 = arith.constant 0 : index
    %c0_0 = arith.constant 0 : index
    %0 = vector.load %arg1[%c0, %c0_0] : memref<4x64xf32, #tpu.memory_space<vmem>>, vector<4x64xf32>
    %c0_1 = arith.constant 0 : index
    %c0_2 = arith.constant 0 : index
    %1 = vector.load %arg2[%c0_1, %c0_2] : memref<64x128xf32, #tpu.memory_space<vmem>>, vector<64x128xf32>
    %cst = arith.constant dense<0.000000e+00> : vector<4x128xf32>
    %2 = tpu.matmul %0, %1, %cst {dimension_numbers = #tpu.dot_dimension_numbers<[1], [0], [0], [1], [0, 0, 1, 1], [], []>} : vector<4x64xf32>, vector<64x128xf32>, vector<4x128xf32> -> vector<4x128xf32>
    %c0_3 = arith.constant 0 : index
    %c0_4 = arith.constant 0 : index
    %3 = vector.load %arg3[%c0_3, %c0_4] : memref<1x128xf32, #tpu.memory_space<vmem>>, vector<1x128xf32>
    %4 = vector.broadcast %3 : vector<1x128xf32> to vector<4x128xf32>
    %5 = arith.addf %2, %4 : vector<4x128xf32>
    %cst_5 = arith.constant 0.000000e+00 : f32
    %6 = vector.broadcast %cst_5 : f32 to vector<4x128xf32>
    %7 = arith.maximumf %5, %6 : vector<4x128xf32>
    %c0_6 = arith.constant 0 : index
    %c0_7 = arith.constant 0 : index
    %8 = vector.load %arg4[%c0_6, %c0_7] : memref<4x128xf32, #tpu.memory_space<vmem>>, vector<4x128xf32>
    tpu.vector_store %arg4[%c0_6, %c0_7], %7 {strides = array<i32>} : memref<4x128xf32, #tpu.memory_space<vmem>>, vector<4x128xf32>,
    return
  }
  func.func @transform_0(%arg0: i32) -> (i32, i32) {
    %c0_i32 = arith.constant 0 : i32
    %c0_i32_0 = arith.constant 0 : i32
    return %arg0, %c0_i32 : i32, i32
  }
  func.func @transform_1(%arg0: i32) -> (i32, i32) {
    %c0_i32 = arith.constant 0 : i32
    %c0_i32_0 = arith.constant 0 : i32
    %c0_i32_1 = arith.constant 0 : i32
    return %c0_i32, %c0_i32_0 : i32, i32
  }
  func.func @transform_2(%arg0: i32) -> (i32, i32) {
    %c0_i32 = arith.constant 0 : i32
    %c0_i32_0 = arith.constant 0 : i32
    %c0_i32_1 = arith.constant 0 : i32
    return %c0_i32, %c0_i32_0 : i32, i32
  }
  func.func @transform_3(%arg0: i32) -> (i32, i32) {
    %c0_i32 = arith.constant 0 : i32
    %c0_i32_0 = arith.constant 0 : i32
    return %arg0, %c0_i32 : i32, i32
  }
}

</mosaic_0001>

<llo_original>
// kernel: tile.13
$region0: #{tile.13}
  #allocation0 [shape = 's32[1]{0}', space=sflag, size = 0x4, scoped, tag = 'scoped memory for tile.13']
  %s0 = inlined_call_operand.vmem [shape: f32[32], index: 0, kind: input, shape index: {}]
  %s1 = inlined_call_operand.vmem [shape: f32[4,32], index: 1, kind: output, shape index: {}]
  // Predicated region
  $region2: #{tile.13} parent=0 // pred_check
    _
  $region3: #{tile.13} parent=0 // pred_check_branch
    %3 = sbr.rel (0) target = $region5
  $region4: #{tile.13} parent=0 // pred_region
    _
  $region5: #{tile.13} parent=0 // pred_fallthru
    _
  %v4 = vld [vmem:[%s0] ss:$0 sm:$0xff]
  %5 = vst [vmem:[%s1] sm:$0xf] %v4

// kernel: mul.25
$region0: #{mul.25}
  %s0 = inlined_call_operand.vmem [shape: f32[4,32], index: 0, kind: input, shape index: {}]
  %s1 = inlined_call_operand.vmem [shape: f32[128], index: 1, kind: output, shape index: {}]
  $region1: #{mul.25} parent=0
    #allocation0 [shape = 'u8[4096]{0}', space=vmem, size = 0x1000, scoped, tag = 'scoped mem for output reshape']
    #allocation1 [shape = 'u8[4096]{0}', space=vmem, size = 0x1000, scoped, tag = 'scoped mem for input reshape']
    %s3 = sshllo.u32 0, 4
    %v4 = vld [vmem:[%s0] sm:%s3]
    %5 = vst [vmem:[#allocation1] sm:%s3] %v4
    %v6 = vld [vmem:[#allocation1] sm:$0x1]
    %vm7 = vcmask 261120
    %8 = vst.msk [vmem:[#allocation0] sm:$0x1] %vm7, %v6
    %s9 = scalar_lea.vmem [#allocation1], 3
    %v10 = vld [vmem:[%s9] sm:$0x1]
    %11 = vrot.lane.b32.xlu0 %v10, 96
    %v12 = vpop.permute.xlu0 %11
    %vm13 = vcmask 1048320
    %14 = vst.msk [vmem:[#allocation0] sm:$0x1] %vm13, %v12
    %s15 = scalar_lea.vmem [#allocation1], 2
    %v16 = vld [vmem:[%s15] sm:$0x1]
    %17 = vrot.lane.b32.xlu0 %v16, 64
    %v18 = vpop.permute.xlu0 %17
    %vm19 = vcmask 785920
    %20 = vst.msk [vmem:[#allocation0] sm:$0x1] %vm19, %v18
    %s21 = scalar_lea.vmem [#allocation1], 1
    %v22 = vld [vmem:[%s21] sm:$0x1]
    %23 = vrot.lane.b32.xlu0 %v22, 32
    %v24 = vpop.permute.xlu0 %23
    %vm25 = vcmask 523520
    %26 = vst.msk [vmem:[#allocation0] sm:$0x1] %vm25, %v24
    %s28 = sshllo.u32 0, 1
    %v30 = vld [vmem:[#allocation0] sm:%s28]
    %s31 = sshllo.u32 0, 1
    %32 = vst [vmem:[%s1] sm:%s31] %v30

// kernel: tile.19
$region0: #{tile.19}
  %s0 = inlined_call_operand.vmem [shape: f32[4,32], index: 0, kind: input, shape index: {}]
  %s1 = inlined_call_operand.vmem [shape: f32[1,128], index: 1, kind: output, shape index: {}]
  $region1: #{tile.19} parent=0
    #allocation0 [shape = 'u8[4096]{0}', space=vmem, size = 0x1000, scoped, tag = 'scoped mem for output reshape']
    #allocation1 [shape = 'u8[4096]{0}', space=vmem, size = 0x1000, scoped, tag = 'scoped mem for input reshape']
    %s3 = sshllo.u32 0, 4
    %v4 = vld [vmem:[%s0] sm:%s3]
    %5 = vst [vmem:[#allocation1] sm:%s3] %v4
    %v6 = vld [vmem:[#allocation1] sm:$0x1]
    %vm7 = vcmask 261120
    %8 = vst.msk [vmem:[#allocation0] sm:$0x1] %vm7, %v6
    %s9 = scalar_lea.vmem [#allocation1], 3
    %v10 = vld [vmem:[%s9] sm:$0x1]
    %11 = vrot.lane.b32.xlu0 %v10, 96
    %v12 = vpop.permute.xlu0 %11
    %vm13 = vcmask 1048320
    %14 = vst.msk [vmem:[#allocation0] sm:$0x1] %vm13, %v12
    %s15 = scalar_lea.vmem [#allocation1], 2
    %v16 = vld [vmem:[%s15] sm:$0x1]
    %17 = vrot.lane.b32.xlu0 %v16, 64
    %v18 = vpop.permute.xlu0 %17
    %vm19 = vcmask 785920
    %20 = vst.msk [vmem:[#allocation0] sm:$0x1] %vm19, %v18
    %s21 = scalar_lea.vmem [#allocation1], 1
    %v22 = vld [vmem:[%s21] sm:$0x1]
    %23 = vrot.lane.b32.xlu0 %v22, 32
    %v24 = vpop.permute.xlu0 %23
    %vm25 = vcmask 523520
    %26 = vst.msk [vmem:[#allocation0] sm:$0x1] %vm25, %v24
    %s28 = sshllo.u32 0, 1
    %v30 = vld [vmem:[#allocation0] sm:%s28]
    %s31 = sshllo.u32 0, 1
    %32 = vst [vmem:[%s1] sm:%s31] %v30

// kernel: mlp_forward.3
$region0: #{mlp_forward.3}
  #allocation0 [shape = 'u32[]', space=smem, size = 0x4, offset = 0x4, fixed_abs, tag = 'smem constant byte address 0x4 - core index']
  #allocation1 [shape = 'u32[144,128]{1,0:T(1,128)}', space=vmem, size = 0x12000, scoped, tag = 'internal scratch']
  %s0 = inlined_call_operand.vmem [shape: f32[4,64], index: 0, kind: input, shape index: {}]
  %s1 = inlined_call_operand.vmem [shape: f32[64,128], index: 1, kind: input, shape index: {}]
  %s2 = inlined_call_operand.vmem [shape: f32[1,128], index: 2, kind: input, shape index: {}]
  %s3 = inlined_call_operand.vmem [shape: f32[4,128], index: 3, kind: output, shape index: {}]
  %s4 = sld [smem:[#allocation0]]
  $region22: #{mlp_forward.3} parent=0
    _
  %s6 = ssub.s32 1, %s4
  %s7 = scalar_select 0, %s6, %s4
  // Predicated region
  $region2: #{mlp_forward.3} parent=0 // pred_check
    _
  $region3: #{mlp_forward.3} parent=0 // pred_check_branch
    %9 = sbr.rel (0) target = $region5
  $region4: #{mlp_forward.3} parent=0 // pred_region
    _
  $region5: #{mlp_forward.3} parent=0 // pred_fallthru
    _
  // Predicated region
  $region6: #{mlp_forward.3} parent=0 // pred_check
    _
  $region7: #{mlp_forward.3} parent=0 // pred_check_branch
    %11 = sbr.rel (0) target = $region9
  $region8: #{mlp_forward.3} parent=0 // pred_region
    _
  $region9: #{mlp_forward.3} parent=0 // pred_fallthru
    _
  // Predicated region
  $region10: #{mlp_forward.3} parent=0 // pred_check
    _
  $region11: #{mlp_forward.3} parent=0 // pred_check_branch
    %13 = sbr.rel (0) target = $region13
  $region12: #{mlp_forward.3} parent=0 // pred_region
    _
  $region13: #{mlp_forward.3} parent=0 // pred_fallthru
    _
  %v14 = vld [vmem:[%s0] sm:$0xf]
  %v15 = vld [vmem:[%s1] sm:$0xff]
  %v16 = vld [vmem:[%s1 + $0x8] sm:$0xff]
  %v17 = vld [vmem:[%s1 + $0x10] sm:$0xff]
  %v18 = vld [vmem:[%s1 + $0x18] sm:$0xff]
  %v19 = vld [vmem:[%s1 + $0x20] sm:$0xff]
  %v20 = vld [vmem:[%s1 + $0x28] sm:$0xff]
  %v21 = vld [vmem:[%s1 + $0x30] sm:$0xff]
  %v22 = vld [vmem:[%s1 + $0x38] sm:$0xff]
  %v23 = vld [vmem:[%s2] sm:$0x1]
  %v25 = vlaneseq
  %v26 = vshrl.u32 %v25, 7
  %v27 = vsub.s32 0, %v26
  %v28 = vrot.slane %v23, %v27
  %vm30 = vcmask 523264
  %v32 = vsel %vm30, %v14, 0
  %34 = vmatprep.subr.mxu0 0.0
  %35 = vmatpush1.msra.mxu0 %v15
  %36 = vmatprep.subr.mxu0 0.0
  %37 = vmatpush1.msra.mxu0 %v16
  %38 = vmatprep.subr.mxu0 0.0
  %39 = vmatpush1.msra.mxu0 %v17
  %40 = vmatprep.subr.mxu0 0.0
  %41 = vmatpush1.msra.mxu0 %v18
  %42 = vmatprep.subr.mxu0 0.0
  %43 = vmatpush1.msra.mxu0 %v19
  %44 = vmatprep.subr.mxu0 0.0
  %45 = vmatpush1.msra.mxu0 %v20
  %46 = vmatprep.subr.mxu0 0.0
  %47 = vmatpush1.msra.mxu0 %v21
  %48 = vmatprep.subr.mxu0 0.0
  %49 = vmatpush1.msra.mxu0 %v22
  %50 = vmatprep.subr.mxu0 0.0
  %51 = vmatpush1.msra.mxu0 0.0
  %52 = vmatprep.subr.mxu0 0.0
  %53 = vmatpush1.msra.mxu0 0.0
  %54 = vmatprep.subr.mxu0 0.0
  %55 = vmatpush1.msra.mxu0 0.0
  %56 = vmatprep.subr.mxu0 0.0
  %57 = vmatpush1.msra.mxu0 0.0
  %58 = vmatprep.subr.mxu0 0.0
  %59 = vmatpush1.msra.mxu0 0.0
  %60 = vmatprep.subr.mxu0 0.0
  %61 = vmatpush1.msra.mxu0 0.0
  %62 = vmatprep.subr.mxu0 0.0
  %63 = vmatpush1.msra.mxu0 0.0
  %64 = vmatprep.subr.mxu0 0.0
  %65 = vmatpush1.msra.mxu0 0.0
  %66 = vmatprep.subr.mxu0 0.0
  %67 = vmatpush1.msra.mxu0 0.0
  %68 = vmatprep.subr.mxu0 0.0
  %69 = vmatpush1.msra.mxu0 0.0
  %70 = vmatprep.subr.mxu0 0.0
  %71 = vmatpush1.msra.mxu0 0.0
  %72 = vmatprep.subr.mxu0 0.0
  %73 = vmatpush1.msra.mxu0 0.0
  %74 = vmatprep.subr.mxu0 0.0
  %75 = vmatpush1.msra.mxu0 0.0
  %76 = vmatprep.subr.mxu0 0.0
  %77 = vmatpush1.msra.mxu0 0.0
  %78 = vmatprep.subr.mxu0 0.0
  %79 = vmatpush1.msra.mxu0 0.0
  %80 = vmatprep.subr.mxu0 0.0
  %81 = vmatpush1.msra.mxu0 0.0
  %82 = vmatprep.subr.mxu0 0.0
  %83 = vmatpush1.msra.mxu0 0.0
  %84 = vmatprep.subr.mxu0 0.0
  %85 = vmatpush1.msra.mxu0 0.0
  %86 = vmatprep.subr.mxu0 0.0
  %87 = vmatpush1.msra.mxu0 0.0
  %88 = vmatprep.subr.mxu0 0.0
  %89 = vmatpush1.msra.mxu0 0.0
  %90 = vmatprep.subr.mxu0 0.0
  %91 = vmatpush1.msra.mxu0 0.0
  %92 = vmatprep.subr.mxu0 0.0
  %93 = vmatpush1.msra.mxu0 0.0
  %94 = vmatprep.subr.mxu0 0.0
  %95 = vmatpush1.msra.mxu0 0.0
  %96 = vmatprep.subr.mxu0 0.0
  %97 = vmatpush1.msra.mxu0 0.0
  %98 = vmatprep.mubr.f32.mxu0 0.0
  %99 = vmatmul.mubr.f32.gmra.mrb[0].mxu0 %v32
  %v100 = vpop.f32.mrb[0].mxu0
  %v101 = vadd.f32 %v28, %v100
  %v102 = vpop.f32.mrb[0].mxu0
  %103 = vdwg.mxu0
  %v104 = vmax.f32 %v101, 0.0
  %105 = vst [vmem:[%s3] sm:$0xf] %v104
  // Predicated region
  $region14: #{mlp_forward.3} parent=0 // pred_check
    _
  $region15: #{mlp_forward.3} parent=0 // pred_check_branch
    %107 = sbr.rel (0) target = $region17
  $region16: #{mlp_forward.3} parent=0 // pred_region
    _
  $region17: #{mlp_forward.3} parent=0 // pred_fallthru
    _
  // Predicated region
  $region18: #{mlp_forward.3} parent=0 // pred_check
    _
  $region19: #{mlp_forward.3} parent=0 // pred_check_branch
    %109 = sbr.rel (0) target = $region21
  $region20: #{mlp_forward.3} parent=0 // pred_region
    _
  $region21: #{mlp_forward.3} parent=0 // pred_fallthru
    _

// kernel: mlp_forward.2
$region0: #{mlp_forward.2}
  #allocation0 [shape = 'u32[]', space=smem, size = 0x4, offset = 0x4, fixed_abs, tag = 'smem constant byte address 0x4 - core index']
  #allocation1 [shape = 'u32[144,128]{1,0:T(1,128)}', space=vmem, size = 0x12000, scoped, tag = 'internal scratch']
  %s0 = inlined_call_operand.vmem [shape: f32[16,64], index: 0, kind: input, shape index: {}]
  %s1 = inlined_call_operand.vmem [shape: f32[64,128], index: 1, kind: input, shape index: {}]
  %s2 = inlined_call_operand.vmem [shape: f32[16,128], index: 2, kind: output, shape index: {0}]
  %s3 = inlined_call_operand.vmem [shape: f32[16,128], index: 3, kind: output, shape index: {1}]
  %4 = xla_tuple %s2, %s3
  %s5 = sld [smem:[#allocation0]]
  $region53: #{mlp_forward.2} parent=0
    _
  %s7 = ssub.s32 1, %s5
  %s8 = scalar_select 0, %s7, %s5
  loop: start=0, step=1, limit=4
  $region2: #{mlp_forward.2} parent=0 // loop_pre_header
    _
  $region3: #{mlp_forward.2} parent=0 // loop_header
    %s10 = sphi 0, %s14
    %p11 = scmp.ge.s32.totalorder %s10, 4
    %s17 = sphi 0, %s29
    %s18 = sphi 0, %s25
    %s19 = sphi 0, %s17
    %s20 = sphi 0, %s18
    %s21 = sphi 0, %s19
    %s22 = sphi 0, %s20
    %s34 = sphi 0, %s36
    %s37 = sphi 0, %s34
    %s38 = sphi 0, %s37
    %s54 = sphi 0, %s38
    %s58 = sphi 0, %s58
    %s60 = sphi 0, %s58
    %s61 = sphi 0, %s60
    %s75 = sphi 0, %s61
    %s81 = sphi 0, %s83
    %s84 = sphi 0, %s81
    %s85 = sphi 0, %s84
    %s101 = sphi 0, %s85
    %s107 = sphi 0, %s109
    %s110 = sphi 0, %s107
    %s111 = sphi 0, %s110
    %s127 = sphi 0, %s111
  $region4: #{mlp_forward.2} parent=0 // loop_header_branch
    %13 = sbr.rel (%p11) target = $region8
  $region5: #{mlp_forward.2} parent=0 // loop_body
    %s15 = ssub.s32 %s10, 1
    %s16 = ssub.s32 %s10, 2
    %s23 = sadd.s32 1, %s18
    %p24 = scmp.ge.s32.totalorder %s23, 1
    %s25 = scalar_select %p24, 0, %s23
    %s26 = sadd.s32 1, %s17
    %s27 = scalar_select %p24, %s26, %s17
    %p28 = scmp.ge.s32.totalorder %s27, 2
    %s29 = scalar_select %p28, 0, %s27
    %s30 = sadd.s32 %s17, %s18
    %s31 = sadd.s32 %s29, %s25
    %s32 = ssub.s32 %s30, %s31
    %p33 = scmp.eq.s32.totalorder %s32, 0
    %s35 = sadd.s32 %s34, 1
    %s36 = scalar_select %p33, %s34, %s35
    %p39 = pneg %p33
    %p40 = scmp.eq.s32.totalorder %s10, 1
    %p41 = por %p39, %p40
    %p42 = scmp.ne.s32.totalorder %s34, %s37
    %p43 = scmp.eq.s32.totalorder %s10, 0
    %p44 = por %p42, %p43
    %p45 = scmp.ne.s32.totalorder %s34, %s37
    %p46 = scmp.eq.s32.totalorder %s15, 1
    %p47 = por %p45, %p46
    %p48 = scmp.ne.s32.totalorder %s37, %s38
    %p49 = scmp.eq.s32.totalorder %s15, 0
    %p50 = por %p48, %p49
    %p51 = scmp.ne.s32.totalorder %s37, %s38
    %p52 = scmp.eq.s32.totalorder %s16, 1
    %p53 = por %p51, %p52
    %p55 = scmp.ne.s32.totalorder %s38, %s54
    %p56 = scmp.eq.s32.totalorder %s16, 0
    %p57 = por %p55, %p56
    %s59 = sadd.s32 %s58, 1
    %p62 = scmp.eq.s32.totalorder %s10, 1
    %p63 = scmp.ne.s32.totalorder %s58, %s60
    %p64 = scmp.eq.s32.totalorder %s10, 0
    %p65 = por %p63, %p64
    %p66 = scmp.ne.s32.totalorder %s58, %s60
    %p67 = scmp.eq.s32.totalorder %s15, 1
    %p68 = por %p66, %p67
    %p69 = scmp.ne.s32.totalorder %s60, %s61
    %p70 = scmp.eq.s32.totalorder %s15, 0
    %p71 = por %p69, %p70
    %p72 = scmp.ne.s32.totalorder %s60, %s61
    %p73 = scmp.eq.s32.totalorder %s16, 1
    %p74 = por %p72, %p73
    %p76 = scmp.ne.s32.totalorder %s61, %s75
    %p77 = scmp.eq.s32.totalorder %s16, 0
    %p78 = por %p76, %p77
    %s79 = ssub.s32 %s17, %s29
    %p80 = scmp.eq.s32.totalorder %s79, 0
    %s82 = sadd.s32 %s81, 1
    %s83 = scalar_select %p80, %s81, %s82
    %p86 = pneg %p80
    %p87 = scmp.eq.s32.totalorder %s10, 1
    %p88 = por %p86, %p87
    %p89 = scmp.ne.s32.totalorder %s81, %s84
    %p90 = scmp.eq.s32.totalorder %s10, 0
    %p91 = por %p89, %p90
    %p92 = scmp.ne.s32.totalorder %s81, %s84
    %p93 = scmp.eq.s32.totalorder %s15, 1
    %p94 = por %p92, %p93
    %p95 = scmp.ne.s32.totalorder %s84, %s85
    %p96 = scmp.eq.s32.totalorder %s15, 0
    %p97 = por %p95, %p96
    %p98 = scmp.ne.s32.totalorder %s84, %s85
    %p99 = scmp.eq.s32.totalorder %s16, 1
    %p100 = por %p98, %p99
    %p102 = scmp.ne.s32.totalorder %s85, %s101
    %p103 = scmp.eq.s32.totalorder %s16, 0
    %p104 = por %p102, %p103
    %s105 = ssub.s32 %s17, %s29
    %p106 = scmp.eq.s32.totalorder %s105, 0
    %s108 = sadd.s32 %s107, 1
    %s109 = scalar_select %p106, %s107, %s108
    %p112 = pneg %p106
    %p113 = scmp.eq.s32.totalorder %s10, 1
    %p114 = por %p112, %p113
    %p115 = scmp.ne.s32.totalorder %s107, %s110
    %p116 = scmp.eq.s32.totalorder %s10, 0
    %p117 = por %p115, %p116
    %p118 = scmp.ne.s32.totalorder %s107, %s110
    %p119 = scmp.eq.s32.totalorder %s15, 1
    %p120 = por %p118, %p119
    %p121 = scmp.ne.s32.totalorder %s110, %s111
    %p122 = scmp.eq.s32.totalorder %s15, 0
    %p123 = por %p121, %p122
    %p124 = scmp.ne.s32.totalorder %s110, %s111
    %p125 = scmp.eq.s32.totalorder %s16, 1
    %p126 = por %p124, %p125
    %p128 = scmp.ne.s32.totalorder %s111, %s127
    %p129 = scmp.eq.s32.totalorder %s16, 0
    %p130 = por %p128, %p129
    %p131 = scmp.le.s32.totalorder 1, %s10
    %p132 = scmp.lt.s32.totalorder %s10, 3
    %p133 = pnand %p131, %p132
    %p134 = pneg %p133
    // Predicated region
    $region9: #{mlp_forward.2} parent=5 // pred_check
      _
    $region10: #{mlp_forward.2} parent=5 // pred_check_branch
      %136 = sbr.rel (%p133) target = $region12
    $region11: #{mlp_forward.2} parent=5 // pred_region
      %s137 = ssub.s32 %s10, 1
      // Predicated region
      $region13: #{mlp_forward.2} parent=11 // pred_check
        %p138 = pneg %p71
      $region14: #{mlp_forward.2} parent=11 // pred_check_branch
        %140 = sbr.rel (%p138) target = $region16
      $region15: #{mlp_forward.2} parent=11 // pred_region
        _
      $region16: #{mlp_forward.2} parent=11 // pred_fallthru
        _
    $region12: #{mlp_forward.2} parent=5 // pred_fallthru
      _
    %p141 = scmp.lt.s32.totalorder %s10, 2
    // Predicated region
    $region17: #{mlp_forward.2} parent=5 // pred_check
      %p142 = pneg %p141
    $region18: #{mlp_forward.2} parent=5 // pred_check_branch
      %144 = sbr.rel (%p142) target = $region20
    $region19: #{mlp_forward.2} parent=5 // pred_region
      // Predicated region
      $region21: #{mlp_forward.2} parent=19 // pred_check
        %p145 = pneg %p44
      $region22: #{mlp_forward.2} parent=19 // pred_check_branch
        %147 = sbr.rel (%p145) target = $region24
      $region23: #{mlp_forward.2} parent=19 // pred_region
        %s148 = sadd.s32 %s17, %s18
        %p149 = scmp.lt.s32.totalorder %s148, 1
        %s150 = scalar_select %p149, %s148, 1
        %s151 = smul.addr %s150, 8
        %s152 = scalar_lea.vmem %s0, %s151
        %s153 = sadd.s32 %s17, %s18
      $region24: #{mlp_forward.2} parent=19 // pred_fallthru
        _
    $region20: #{mlp_forward.2} parent=5 // pred_fallthru
      _
    %p154 = scmp.le.s32.totalorder 1, %s10
    %p155 = scmp.lt.s32.totalorder %s10, 3
    %p156 = pnand %p154, %p155
    %p157 = pneg %p156
    // Predicated region
    $region25: #{mlp_forward.2} parent=5 // pred_check
      _
    $region26: #{mlp_forward.2} parent=5 // pred_check_branch
      %159 = sbr.rel (%p156) target = $region28
    $region27: #{mlp_forward.2} parent=5 // pred_region
      %s160 = ssub.s32 %s10, 1
      %s161 = sadd.s32 %s19, %s20
      %p162 = scmp.lt.s32.totalorder %s161, 1
      %s163 = scalar_select %p162, %s161, 1
      %s164 = smul.addr %s163, 8
      %s165 = scalar_lea.vmem %s0, %s164
      %p166 = pneg %p50
      %p167 = pneg %p47
      %p168 = pneg %p71
      %p169 = pneg %p68
      %p170 = pneg %p97
      %p171 = pneg %p94
      %p172 = scmp.lt.s32.totalorder %s19, 1
      %s173 = scalar_select %p172, %s19, 1
      %s174 = smul.addr %s173, 8
      %s175 = scalar_lea.vmem %s2, %s174
      %p176 = pneg %p123
      %p177 = pneg %p120
      %p178 = scmp.lt.s32.totalorder %s19, 1
      %s179 = scalar_select %p178, %s19, 1
      %s180 = smul.addr %s179, 8
      %s181 = scalar_lea.vmem %s3, %s180
      %s182 = sadd.s32 %s19, %s20
      %p183 = scmp.lt.s32.totalorder %s182, 1
      %s184 = scalar_select %p183, %s182, 1
      %s185 = smul.addr %s184, 8
      %s186 = scalar_lea.vmem %s0, %s185
      %s187 = sadd.s32 %s19, %s20
      %p188 = scmp.lt.s32.totalorder %s19, 1
      %s189 = scalar_select %p188, %s19, 1
      %s190 = smul.addr %s189, 8
      %s191 = scalar_lea.vmem %s2, %s190
      %p192 = scmp.lt.s32.totalorder %s19, 1
      %s193 = scalar_select %p192, %s19, 1
      %s194 = smul.addr %s193, 8
      %s195 = scalar_lea.vmem %s3, %s194
      %p196 = scmp.eq.s32.totalorder %s20, 0
      // Predicated region
      $region29: #{mlp_forward.2} parent=27 // pred_check
        %p197 = pneg %p196
      $region30: #{mlp_forward.2} parent=27 // pred_check_branch
        %199 = sbr.rel (%p197) target = $region32
      $region31: #{mlp_forward.2} parent=27 // pred_region
        %200 = vst [vmem:[%s191] sm:$0xff] 0.0
        %201 = vst [vmem:[%s195] sm:$0xff] 0.0
      $region32: #{mlp_forward.2} parent=27 // pred_fallthru
        _
      %v202 = vld [vmem:[%s186] sm:$0xff]
      %v203 = vld [vmem:[%s1] sm:$0xff]
      %v204 = vld [vmem:[%s1 + $0x8] sm:$0xff]
      %v205 = vld [vmem:[%s1 + $0x10] sm:$0xff]
      %v206 = vld [vmem:[%s1 + $0x18] sm:$0xff]
      %v207 = vld [vmem:[%s1 + $0x20] sm:$0xff]
      %v208 = vld [vmem:[%s1 + $0x28] sm:$0xff]
      %v209 = vld [vmem:[%s1 + $0x30] sm:$0xff]
      %v210 = vld [vmem:[%s1 + $0x38] sm:$0xff]
      %vm211 = vcmask 523264
      %v213 = vsel %vm211, %v202, 0
      %215 = vmatprep.subr.mxu0 0.0
      %216 = vmatpush1.msra.mxu0 %v203
      %217 = vmatprep.subr.mxu0 0.0
      %218 = vmatpush1.msra.mxu0 %v204
      %219 = vmatprep.subr.mxu0 0.0
      %220 = vmatpush1.msra.mxu0 %v205
      %221 = vmatprep.subr.mxu0 0.0
      %222 = vmatpush1.msra.mxu0 %v206
      %223 = vmatprep.subr.mxu0 0.0
      %224 = vmatpush1.msra.mxu0 %v207
      %225 = vmatprep.subr.mxu0 0.0
      %226 = vmatpush1.msra.mxu0 %v208
      %227 = vmatprep.subr.mxu0 0.0
      %228 = vmatpush1.msra.mxu0 %v209
      %229 = vmatprep.subr.mxu0 0.0
      %230 = vmatpush1.msra.mxu0 %v210
      %231 = vmatprep.subr.mxu0 0.0
      %232 = vmatpush1.msra.mxu0 0.0
      %233 = vmatprep.subr.mxu0 0.0
      %234 = vmatpush1.msra.mxu0 0.0
      %235 = vmatprep.subr.mxu0 0.0
      %236 = vmatpush1.msra.mxu0 0.0
      %237 = vmatprep.subr.mxu0 0.0
      %238 = vmatpush1.msra.mxu0 0.0
      %239 = vmatprep.subr.mxu0 0.0
      %240 = vmatpush1.msra.mxu0 0.0
      %241 = vmatprep.subr.mxu0 0.0
      %242 = vmatpush1.msra.mxu0 0.0
      %243 = vmatprep.subr.mxu0 0.0
      %244 = vmatpush1.msra.mxu0 0.0
      %245 = vmatprep.subr.mxu0 0.0
      %246 = vmatpush1.msra.mxu0 0.0
      %247 = vmatprep.subr.mxu0 0.0
      %248 = vmatpush1.msra.mxu0 0.0
      %249 = vmatprep.subr.mxu0 0.0
      %250 = vmatpush1.msra.mxu0 0.0
      %251 = vmatprep.subr.mxu0 0.0
      %252 = vmatpush1.msra.mxu0 0.0
      %253 = vmatprep.subr.mxu0 0.0
      %254 = vmatpush1.msra.mxu0 0.0
      %255 = vmatprep.subr.mxu0 0.0
      %256 = vmatpush1.msra.mxu0 0.0
      %257 = vmatprep.subr.mxu0 0.0
      %258 = vmatpush1.msra.mxu0 0.0
      %259 = vmatprep.subr.mxu0 0.0
      %260 = vmatpush1.msra.mxu0 0.0
      %261 = vmatprep.subr.mxu0 0.0
      %262 = vmatpush1.msra.mxu0 0.0
      %263 = vmatprep.subr.mxu0 0.0
      %264 = vmatpush1.msra.mxu0 0.0
      %265 = vmatprep.subr.mxu0 0.0
      %266 = vmatpush1.msra.mxu0 0.0
      %267 = vmatprep.subr.mxu0 0.0
      %268 = vmatpush1.msra.mxu0 0.0
      %269 = vmatprep.subr.mxu0 0.0
      %270 = vmatpush1.msra.mxu0 0.0
      %271 = vmatprep.subr.mxu0 0.0
      %272 = vmatpush1.msra.mxu0 0.0
      %273 = vmatprep.subr.mxu0 0.0
      %274 = vmatpush1.msra.mxu0 0.0
      %275 = vmatprep.subr.mxu0 0.0
      %276 = vmatpush1.msra.mxu0 0.0
      %277 = vmatprep.subr.mxu0 0.0
      %278 = vmatpush1.msra.mxu0 0.0
      %279 = vmatprep.mubr.f32.mxu0 0.0
      %280 = vmatmul.mubr.f32.gmra.mrb[0].mxu0 %v213
      %v281 = vpop.f32.mrb[0].mxu0
      %v282 = vadd.f32 0.0, %v281
      %v283 = vpop.f32.mrb[0].mxu0
      %284 = vdwg.mxu0
      %v285 = vld [vmem:[%s191] sm:$0xff]
      %vm286 = vcmask 64512
      %v288 = vsel %vm286, 1.0, 0
      %290 = vmatprep.subr.mxu0 0.0
      %291 = vmatpush1.msra.mxu0 %v282
      %292 = vmatprep.subr.mxu0 0.0
      %293 = vmatpush1.msra.mxu0 0.0
      %294 = vmatprep.subr.mxu0 0.0
      %295 = vmatpush1.msra.mxu0 0.0
      %296 = vmatprep.subr.mxu0 0.0
      %297 = vmatpush1.msra.mxu0 0.0
      %298 = vmatprep.subr.mxu0 0.0
      %299 = vmatpush1.msra.mxu0 0.0
      %300 = vmatprep.subr.mxu0 0.0
      %301 = vmatpush1.msra.mxu0 0.0
      %302 = vmatprep.subr.mxu0 0.0
      %303 = vmatpush1.msra.mxu0 0.0
      %304 = vmatprep.subr.mxu0 0.0
      %305 = vmatpush1.msra.mxu0 0.0
      %306 = vmatprep.subr.mxu0 0.0
      %307 = vmatpush1.msra.mxu0 0.0
      %308 = vmatprep.subr.mxu0 0.0
      %309 = vmatpush1.msra.mxu0 0.0
      %310 = vmatprep.subr.mxu0 0.0
      %311 = vmatpush1.msra.mxu0 0.0
      %312 = vmatprep.subr.mxu0 0.0
      %313 = vmatpush1.msra.mxu0 0.0
      %314 = vmatprep.subr.mxu0 0.0
      %315 = vmatpush1.msra.mxu0 0.0
      %316 = vmatprep.subr.mxu0 0.0
      %317 = vmatpush1.msra.mxu0 0.0
      %318 = vmatprep.subr.mxu0 0.0
      %319 = vmatpush1.msra.mxu0 0.0
      %320 = vmatprep.subr.mxu0 0.0
      %321 = vmatpush1.msra.mxu0 0.0
      %322 = vmatprep.subr.mxu0 0.0
      %323 = vmatpush1.msra.mxu0 0.0
      %324 = vmatprep.subr.mxu0 0.0
      %325 = vmatpush1.msra.mxu0 0.0
      %326 = vmatprep.subr.mxu0 0.0
      %327 = vmatpush1.msra.mxu0 0.0
      %328 = vmatprep.subr.mxu0 0.0
      %329 = vmatpush1.msra.mxu0 0.0
      %330 = vmatprep.subr.mxu0 0.0
      %331 = vmatpush1.msra.mxu0 0.0
      %332 = vmatprep.subr.mxu0 0.0
      %333 = vmatpush1.msra.mxu0 0.0
      %334 = vmatprep.subr.mxu0 0.0
      %335 = vmatpush1.msra.mxu0 0.0
      %336 = vmatprep.subr.mxu0 0.0
      %337 = vmatpush1.msra.mxu0 0.0
      %338 = vmatprep.subr.mxu0 0.0
      %339 = vmatpush1.msra.mxu0 0.0
      %340 = vmatprep.subr.mxu0 0.0
      %341 = vmatpush1.msra.mxu0 0.0
      %342 = vmatprep.subr.mxu0 0.0
      %343 = vmatpush1.msra.mxu0 0.0
      %344 = vmatprep.subr.mxu0 0.0
      %345 = vmatpush1.msra.mxu0 0.0
      %346 = vmatprep.subr.mxu0 0.0
      %347 = vmatpush1.msra.mxu0 0.0
      %348 = vmatprep.subr.mxu0 0.0
      %349 = vmatpush1.msra.mxu0 0.0
      %350 = vmatprep.subr.mxu0 0.0
      %351 = vmatpush1.msra.mxu0 0.0
      %352 = vmatprep.subr.mxu0 0.0
      %353 = vmatpush1.msra.mxu0 0.0
      %354 = vmatprep.mubr.f32.mxu0 0.0
      %355 = vmatmul.mubr.f32.gmra.mrb[0].mxu0 %v288
      %v356 = vpop.f32.mrb[0].mxu0
      %v357 = vadd.f32 0.0, %v356
      %v358 = vpop.f32.mrb[0].mxu0
      %359 = vdwg.mxu0
      %v360 = vadd.f32 %v285, %v357
      %361 = vst [vmem:[%s191] sm:$0xff] %v360
      %v362 = vld [vmem:[%s195] sm:$0xff]
      %v363 = vmul.f32 %v282, %v282
      %364 = vmatprep.subr.mxu0 0.0
      %365 = vmatpush1.msra.mxu0 %v363
      %366 = vmatprep.subr.mxu0 0.0
      %367 = vmatpush1.msra.mxu0 0.0
      %368 = vmatprep.subr.mxu0 0.0
      %369 = vmatpush1.msra.mxu0 0.0
      %370 = vmatprep.subr.mxu0 0.0
      %371 = vmatpush1.msra.mxu0 0.0
      %372 = vmatprep.subr.mxu0 0.0
      %373 = vmatpush1.msra.mxu0 0.0
      %374 = vmatprep.subr.mxu0 0.0
      %375 = vmatpush1.msra.mxu0 0.0
      %376 = vmatprep.subr.mxu0 0.0
      %377 = vmatpush1.msra.mxu0 0.0
      %378 = vmatprep.subr.mxu0 0.0
      %379 = vmatpush1.msra.mxu0 0.0
      %380 = vmatprep.subr.mxu0 0.0
      %381 = vmatpush1.msra.mxu0 0.0
      %382 = vmatprep.subr.mxu0 0.0
      %383 = vmatpush1.msra.mxu0 0.0
      %384 = vmatprep.subr.mxu0 0.0
      %385 = vmatpush1.msra.mxu0 0.0
      %386 = vmatprep.subr.mxu0 0.0
      %387 = vmatpush1.msra.mxu0 0.0
      %388 = vmatprep.subr.mxu0 0.0
      %389 = vmatpush1.msra.mxu0 0.0
      %390 = vmatprep.subr.mxu0 0.0
      %391 = vmatpush1.msra.mxu0 0.0
      %392 = vmatprep.subr.mxu0 0.0
      %393 = vmatpush1.msra.mxu0 0.0
      %394 = vmatprep.subr.mxu0 0.0
      %395 = vmatpush1.msra.mxu0 0.0
      %396 = vmatprep.subr.mxu0 0.0
      %397 = vmatpush1.msra.mxu0 0.0
      %398 = vmatprep.subr.mxu0 0.0
      %399 = vmatpush1.msra.mxu0 0.0
      %400 = vmatprep.subr.mxu0 0.0
      %401 = vmatpush1.msra.mxu0 0.0
      %402 = vmatprep.subr.mxu0 0.0
      %403 = vmatpush1.msra.mxu0 0.0
      %404 = vmatprep.subr.mxu0 0.0
      %405 = vmatpush1.msra.mxu0 0.0
      %406 = vmatprep.subr.mxu0 0.0
      %407 = vmatpush1.msra.mxu0 0.0
      %408 = vmatprep.subr.mxu0 0.0
      %409 = vmatpush1.msra.mxu0 0.0
      %410 = vmatprep.subr.mxu0 0.0
      %411 = vmatpush1.msra.mxu0 0.0
      %412 = vmatprep.subr.mxu0 0.0
      %413 = vmatpush1.msra.mxu0 0.0
      %414 = vmatprep.subr.mxu0 0.0
      %415 = vmatpush1.msra.mxu0 0.0
      %416 = vmatprep.subr.mxu0 0.0
      %417 = vmatpush1.msra.mxu0 0.0
      %418 = vmatprep.subr.mxu0 0.0
      %419 = vmatpush1.msra.mxu0 0.0
      %420 = vmatprep.subr.mxu0 0.0
      %421 = vmatpush1.msra.mxu0 0.0
      %422 = vmatprep.subr.mxu0 0.0
      %423 = vmatpush1.msra.mxu0 0.0
      %424 = vmatprep.subr.mxu0 0.0
      %425 = vmatpush1.msra.mxu0 0.0
      %426 = vmatprep.subr.mxu0 0.0
      %427 = vmatpush1.msra.mxu0 0.0
      %428 = vmatprep.mubr.f32.mxu0 0.0
      %429 = vmatmul.mubr.f32.gmra.mrb[0].mxu0 %v288
      %v430 = vpop.f32.mrb[0].mxu0
      %v431 = vadd.f32 0.0, %v430
      %v432 = vpop.f32.mrb[0].mxu0
      %433 = vdwg.mxu0
      %v434 = vadd.f32 %v362, %v431
      %435 = vst [vmem:[%s195] sm:$0xff] %v434
      %p436 = scmp.lt.s32.totalorder %s19, 1
      %s437 = scalar_select %p436, %s19, 1
      %s438 = smul.addr %s437, 8
      %s439 = scalar_lea.vmem %s2, %s438
      %p440 = scmp.lt.s32.totalorder %s19, 1
      %s441 = scalar_select %p440, %s19, 1
      %s442 = smul.addr %s441, 8
      %s443 = scalar_lea.vmem %s3, %s442
      // Predicated region
      $region33: #{mlp_forward.2} parent=27 // pred_check
        %p444 = pneg %p94
      $region34: #{mlp_forward.2} parent=27 // pred_check_branch
        %446 = sbr.rel (%p444) target = $region36
      $region35: #{mlp_forward.2} parent=27 // pred_region
        _
      $region36: #{mlp_forward.2} parent=27 // pred_fallthru
        _
      // Predicated region
      $region37: #{mlp_forward.2} parent=27 // pred_check
        %p447 = pneg %p120
      $region38: #{mlp_forward.2} parent=27 // pred_check_branch
        %449 = sbr.rel (%p447) target = $region40
      $region39: #{mlp_forward.2} parent=27 // pred_region
        _
      $region40: #{mlp_forward.2} parent=27 // pred_fallthru
        _
    $region28: #{mlp_forward.2} parent=5 // pred_fallthru
      _
    %p450 = scmp.le.s32.totalorder 2, %s10
    // Predicated region
    $region41: #{mlp_forward.2} parent=5 // pred_check
      %p451 = pneg %p450
    $region42: #{mlp_forward.2} parent=5 // pred_check_branch
      %453 = sbr.rel (%p451) target = $region44
    $region43: #{mlp_forward.2} parent=5 // pred_region
      %s454 = ssub.s32 %s10, 2
      // Predicated region
      $region45: #{mlp_forward.2} parent=43 // pred_check
        %p455 = pneg %p100
      $region46: #{mlp_forward.2} parent=43 // pred_check_branch
        %457 = sbr.rel (%p455) target = $region48
      $region47: #{mlp_forward.2} parent=43 // pred_region
        %p458 = scmp.lt.s32.totalorder %s21, 1
        %s459 = scalar_select %p458, %s21, 1
        %s460 = smul.addr %s459, 8
        %s461 = scalar_lea.vmem %s2, %s460
      $region48: #{mlp_forward.2} parent=43 // pred_fallthru
        _
      // Predicated region
      $region49: #{mlp_forward.2} parent=43 // pred_check
        %p462 = pneg %p126
      $region50: #{mlp_forward.2} parent=43 // pred_check_branch
        %464 = sbr.rel (%p462) target = $region52
      $region51: #{mlp_forward.2} parent=43 // pred_region
        %p465 = scmp.lt.s32.totalorder %s21, 1
        %s466 = scalar_select %p465, %s21, 1
        %s467 = smul.addr %s466, 8
        %s468 = scalar_lea.vmem %s3, %s467
      $region52: #{mlp_forward.2} parent=43 // pred_fallthru
        _
    $region44: #{mlp_forward.2} parent=5 // pred_fallthru
      _
  $region6: #{mlp_forward.2} parent=0 // loop_footer
    %s14 = sadd.s32 1, %s10
  $region7: #{mlp_forward.2} parent=0 // loop_footer_branch
    %9 = sbr.rel target = $region3
  $region8: #{mlp_forward.2} parent=0 // loop_exit
    _

</llo_original>
